<compile_context>
chip_gen: v7x
topology: tpu7x:2x2x1
jax: 0.10.0
libtpu: 0.0.40
codegen_flags: <defaults>
</compile_context>

<pallas_src>
import jax
import jax.numpy as jnp
from jax.experimental import pallas as pl
from jax.experimental.pallas import tpu as pltpu

IN_DIM = 5
H1 = 64
H1_PAD = 128   # lane-dense intermediate (64 -> 128 zero pad)
H2 = 128
K_PAD = 8      # in_dim padded 5 -> 8


def _make_kernel(in_dim: int, layer1_on_mxu: bool):
    def kernel(x_ref, w1_ref, b1_ref, w2_ref, b2_ref, o_ref):
        x = x_ref[...]                       # (tb, K_PAD)  f32
        w1 = w1_ref[...]                     # (K_PAD, H1_PAD) f32

        # ---- Layer 1 -----------------------------------------------------
        if layer1_on_mxu:
            # K=8 matmul on the MXU: removes the XLU lane-broadcast chain
            # (the binding slot on v7x at large tiles); MXU has ample slack
            # on v6e/v7x.
            h = jnp.dot(x, w1, preferred_element_type=jnp.float32)
        else:
            # VPU path (preferred on v5e): in_dim broadcast FMAs, static unroll.
            h = x[:, 0:1] * w1[0:1, :]
            for k in range(1, in_dim):
                h = h + x[:, k:k + 1] * w1[k:k + 1, :]
        h = jnp.maximum(h + b1_ref[...], 0.0)          # bias + ReLU
        # Dropout: identity in eval mode.

        # ---- Layer 2 on the MXU, f32 accumulation --------------------------
        w2 = w2_ref[...]                     # (H1_PAD, H2), f32 or bf16
        y = jnp.dot(h.astype(w2.dtype), w2, preferred_element_type=jnp.float32)
        y = jnp.maximum(y + b2_ref[...], 0.0)          # bias + ReLU
        # Dropout: identity in eval mode.
        o_ref[...] = y.astype(o_ref.dtype)

    return kernel


def tabular_model_forward(x, w1, b1, w2, b2, *, tile_b=4096,
                          out_dtype=jnp.float32, layer1_on_mxu=True,
                          matmul_bf16=False):
    """Eval-mode forward of tabularModel.

    x: (B, in_dim) f32. w1: (in_dim, 64), b1: (64,), w2: (64, 128), b2: (128,)
    (weights stored as (in, out), i.e. transposed vs. torch Linear).

    tile_b:        rows per grid step (multiple of 16). 4096 amortizes the
                   per-step overhead; 8192 is fine too (still < 20 MiB VMEM).
    out_dtype:     jnp.bfloat16 halves HBM writeback on this write-bound kernel.
    layer1_on_mxu: True (default) for v6e/v7x; set False on v5e to keep the
                   tiny-K layer on the VPU.
    matmul_bf16:   v5e option — bf16 layer-2 MXU operands, f32 accumulation
                   (~1e-3 relative error).
    """
    B, in_dim = x.shape
    assert in_dim <= K_PAD
    assert w1.shape == (in_dim, H1) and w2.shape == (H1, H2)
    assert tile_b % 16 == 0, "tile_b must be a multiple of 16"

    # Clamp the tile to the 16-rounded batch so tiny batches don't allocate
    # oversized VMEM blocks; 16 keeps blocks legal for f32 and bf16 outputs.
    tile = min(tile_b, ((B + 15) // 16) * 16)
    grid = (pl.cdiv(B, tile),)

    # --- wrapper-side padding (mathematically exact) ------------------------
    # in_dim 5 -> 8: zero feature columns x zero w1 rows contribute nothing.
    xp = jnp.zeros((B, K_PAD), jnp.float32).at[:, :in_dim].set(
        x.astype(jnp.float32))
    # H1 64 -> 128 so h and the layer-2 LHS are lane-dense: ReLU(0)=0 and the
    # corresponding zero rows of w2 contribute nothing.
    w1p = jnp.zeros((K_PAD, H1_PAD), jnp.float32).at[:in_dim, :H1].set(w1)
    b1p = jnp.zeros((1, H1_PAD), jnp.float32).at[0, :H1].set(b1)
    w2p = jnp.zeros((H1_PAD, H2), jnp.float32).at[:H1, :].set(w2)
    if matmul_bf16:
        w2p = w2p.astype(jnp.bfloat16)
    b2p = b2.reshape(1, H2).astype(jnp.float32)

    kernel = _make_kernel(in_dim, layer1_on_mxu)

    return pl.pallas_call(
        kernel,
        out_shape=jax.ShapeDtypeStruct((B, H2), out_dtype),
        grid_spec=pltpu.PrefetchScalarGridSpec(
            num_scalar_prefetch=0,
            grid=grid,
            in_specs=[
                # x tile: lane dim == full padded feature dim -> legal block;
                # each step's HBM source region is one contiguous tile*32 B.
                pl.BlockSpec((tile, K_PAD), lambda i: (i, 0)),
                # weights / biases: constant block index -> fetched once,
                # stay resident across grid steps.
                pl.BlockSpec((K_PAD, H1_PAD), lambda i: (0, 0)),
                pl.BlockSpec((1, H1_PAD), lambda i: (0, 0)),
                pl.BlockSpec((H1_PAD, H2), lambda i: (0, 0)),
                pl.BlockSpec((1, H2), lambda i: (0, 0)),
            ],
            out_specs=pl.BlockSpec((tile, H2), lambda i: (i, 0)),
        ),
        compiler_params=pltpu.CompilerParams(
            # Batch tiles are independent. On v7x, if profiling shows only one
            # busy TensorCore, switch this axis to pltpu.CORE_PARALLEL.
            dimension_semantics=("parallel",),
            # Explicit scoped-VMEM budget: at tile=8192 the double-buffered
            # (lane-padded) x + f32 output blocks need ~17 MiB — comfortably
            # under this cap and under v7x's 64 MiB physical VMEM.
            vmem_limit_bytes=40 * 1024 * 1024,
        ),
    )(xp, w1p, b1p, w2p, b2p)


def reference_forward(x, w1, b1, w2, b2):
    h = jnp.maximum(x @ w1 + b1, 0.0)
    return jnp.maximum(h @ w2 + b2, 0.0)


if __name__ == "__main__":
    key = jax.random.PRNGKey(0)
    k_x, k_w1, k_b1, k_w2, k_b2 = jax.random.split(key, 5)

    batch = 37  # intentionally not a multiple of the tile -> ragged last block
    x = jax.random.normal(k_x, (batch, IN_DIM), dtype=jnp.float32)

    # Deterministic parameter init (PyTorch Linear-like bounds), stored (in, out).
    bound1 = 1.0 / (IN_DIM ** 0.5)
    w1 = jax.random.uniform(k_w1, (IN_DIM, H1), jnp.float32, -bound1, bound1)
    b1 = jax.random.uniform(k_b1, (H1,), jnp.float32, -bound1, bound1)
    bound2 = 1.0 / (H1 ** 0.5)
    w2 = jax.random.uniform(k_w2, (H1, H2), jnp.float32, -bound2, bound2)
    b2 = jax.random.uniform(k_b2, (H2,), jnp.float32, -bound2, bound2)

    ref = reference_forward(x, w1, b1, w2, b2)

    # 1) Multi-step grid with a partial last block (tile=16, batch=37 -> 3 steps).
    out = jax.block_until_ready(
        tabular_model_forward(x, w1, b1, w2, b2, tile_b=16))
    assert out.shape == (batch, H2)
    assert jnp.allclose(out, ref, atol=1e-5, rtol=1e-5)

    # 2) Default large-tile path (tile clamps to the 16-rounded batch) — exact.
    out = jax.block_until_ready(tabular_model_forward(x, w1, b1, w2, b2))
    assert out.shape == (batch, H2)
    assert jnp.allclose(out, ref, atol=1e-5, rtol=1e-5)

    # 3) VPU layer-1 fallback (v5e path) — still exact.
    out = jax.block_until_ready(
        tabular_model_forward(x, w1, b1, w2, b2, layer1_on_mxu=False))
    assert jnp.allclose(out, ref, atol=1e-5, rtol=1e-5)

    # 4) bf16 output (halves HBM writeback on the write-bound path).
    out_bf16 = jax.block_until_ready(
        tabular_model_forward(x, w1, b1, w2, b2, out_dtype=jnp.bfloat16))
    assert out_bf16.dtype == jnp.bfloat16
    assert jnp.allclose(out_bf16.astype(jnp.float32), ref, atol=5e-2, rtol=5e-2)

    # 5) bf16 layer-2 MXU operands (v5e option), f32 accumulation.
    out = jax.block_until_ready(
        tabular_model_forward(x, w1, b1, w2, b2, matmul_bf16=True))
    assert jnp.allclose(out, ref, atol=3e-2, rtol=3e-2)

    print("KERNEL_OK")
</pallas_src>

<mosaic_0001>
module attributes {stable_mosaic.version = 11 : i64} {
  func.func @kernel(%arg0: i32, %arg1: memref<16x8xf32, #tpu.memory_space<vmem>>, %arg2: memref<8x128xf32, #tpu.memory_space<vmem>>, %arg3: memref<1x128xf32, #tpu.memory_space<vmem>>, %arg4: memref<128x128xf32, #tpu.memory_space<vmem>>, %arg5: memref<1x128xf32, #tpu.memory_space<vmem>>, %arg6: memref<16x128xf32, #tpu.memory_space<vmem>>) attributes {dimension_semantics = [#tpu.dimension_semantics<parallel>], iteration_bounds = array<i64: 3>, scalar_prefetch = 0 : i64, scratch_operands = 0 : i64, tpu.core_type = #tpu.core_type<tc>, window_params = [{transform_indices = @transform_0, window_bounds = array<i64: 16, 8>}, {pipeline_mode = #tpu.pipeline_mode<synchronous>, transform_indices = @transform_1, window_bounds = array<i64: 8, 128>}, {pipeline_mode = #tpu.pipeline_mode<synchronous>, transform_indices = @transform_2, window_bounds = array<i64: 1, 128>}, {pipeline_mode = #tpu.pipeline_mode<synchronous>, transform_indices = @transform_3, window_bounds = array<i64: 128, 128>}, {pipeline_mode = #tpu.pipeline_mode<synchronous>, transform_indices = @transform_4, window_bounds = array<i64: 1, 128>}, {transform_indices = @transform_5, window_bounds = array<i64: 16, 128>}]} {
    %c0 = arith.constant 0 : index
    %c0_0 = arith.constant 0 : index
    %0 = vector.load %arg1[%c0, %c0_0] : memref<16x8xf32, #tpu.memory_space<vmem>>, vector<16x8xf32>
    %c0_1 = arith.constant 0 : index
    %c0_2 = arith.constant 0 : index
    %1 = vector.load %arg2[%c0_1, %c0_2] : memref<8x128xf32, #tpu.memory_space<vmem>>, vector<8x128xf32>
    %cst = arith.constant dense<0.000000e+00> : vector<16x128xf32>
    %2 = tpu.matmul %0, %1, %cst {dimension_numbers = #tpu.dot_dimension_numbers<[1], [0], [0], [1], [0, 0, 1, 1], [], []>} : vector<16x8xf32>, vector<8x128xf32>, vector<16x128xf32> -> vector<16x128xf32>
    %c0_3 = arith.constant 0 : index
    %c0_4 = arith.constant 0 : index
    %3 = vector.load %arg3[%c0_3, %c0_4] : memref<1x128xf32, #tpu.memory_space<vmem>>, vector<1x128xf32>
    %4 = vector.broadcast %3 : vector<1x128xf32> to vector<16x128xf32>
    %5 = arith.addf %2, %4 : vector<16x128xf32>
    %cst_5 = arith.constant 0.000000e+00 : f32
    %6 = vector.broadcast %cst_5 : f32 to vector<16x128xf32>
    %7 = arith.maximumf %5, %6 : vector<16x128xf32>
    %c0_6 = arith.constant 0 : index
    %c0_7 = arith.constant 0 : index
    %8 = vector.load %arg4[%c0_6, %c0_7] : memref<128x128xf32, #tpu.memory_space<vmem>>, vector<128x128xf32>
    %cst_8 = arith.constant dense<0.000000e+00> : vector<16x128xf32>
    %9 = tpu.matmul %7, %8, %cst_8 {dimension_numbers = #tpu.dot_dimension_numbers<[1], [0], [0], [1], [0, 0, 1, 1], [], []>} : vector<16x128xf32>, vector<128x128xf32>, vector<16x128xf32> -> vector<16x128xf32>
    %c0_9 = arith.constant 0 : index
    %c0_10 = arith.constant 0 : index
    %10 = vector.load %arg5[%c0_9, %c0_10] : memref<1x128xf32, #tpu.memory_space<vmem>>, vector<1x128xf32>
    %11 = vector.broadcast %10 : vector<1x128xf32> to vector<16x128xf32>
    %12 = arith.addf %9, %11 : vector<16x128xf32>
    %cst_11 = arith.constant 0.000000e+00 : f32
    %13 = vector.broadcast %cst_11 : f32 to vector<16x128xf32>
    %14 = arith.maximumf %12, %13 : vector<16x128xf32>
    %c0_12 = arith.constant 0 : index
    %c0_13 = arith.constant 0 : index
    %15 = vector.load %arg6[%c0_12, %c0_13] : memref<16x128xf32, #tpu.memory_space<vmem>>, vector<16x128xf32>
    tpu.vector_store %arg6[%c0_12, %c0_13], %14 {strides = array<i32>} : memref<16x128xf32, #tpu.memory_space<vmem>>, vector<16x128xf32>,
    return
  }
  func.func @transform_0(%arg0: i32) -> (i32, i32) {
    %c0_i32 = arith.constant 0 : i32
    %c0_i32_0 = arith.constant 0 : i32
    return %arg0, %c0_i32 : i32, i32
  }
  func.func @transform_1(%arg0: i32) -> (i32, i32) {
    %c0_i32 = arith.constant 0 : i32
    %c0_i32_0 = arith.constant 0 : i32
    %c0_i32_1 = arith.constant 0 : i32
    return %c0_i32, %c0_i32_0 : i32, i32
  }
  func.func @transform_2(%arg0: i32) -> (i32, i32) {
    %c0_i32 = arith.constant 0 : i32
    %c0_i32_0 = arith.constant 0 : i32
    %c0_i32_1 = arith.constant 0 : i32
    return %c0_i32, %c0_i32_0 : i32, i32
  }
  func.func @transform_3(%arg0: i32) -> (i32, i32) {
    %c0_i32 = arith.constant 0 : i32
    %c0_i32_0 = arith.constant 0 : i32
    %c0_i32_1 = arith.constant 0 : i32
    return %c0_i32, %c0_i32_0 : i32, i32
  }
  func.func @transform_4(%arg0: i32) -> (i32, i32) {
    %c0_i32 = arith.constant 0 : i32
    %c0_i32_0 = arith.constant 0 : i32
    %c0_i32_1 = arith.constant 0 : i32
    return %c0_i32, %c0_i32_0 : i32, i32
  }
  func.func @transform_5(%arg0: i32) -> (i32, i32) {
    %c0_i32 = arith.constant 0 : i32
    %c0_i32_0 = arith.constant 0 : i32
    return %arg0, %c0_i32 : i32, i32
  }
}

</mosaic_0001>

<llo_original>
// kernel: tpu_custom_call.1
$region0: #{tpu_custom_call.1}
  #allocation0 [shape = 'u32[]', space=smem, size = 0x4, offset = 0x4, fixed_abs, tag = 'smem constant byte address 0x4 - core index']
  #allocation1 [shape = 'u32[144,128]{1,0:T(1,128)}', space=vmem, size = 0x12000, scoped, tag = 'internal scratch']
  %s0 = inlined_call_operand.vmem [shape: f32[37,8], index: 0, kind: input, shape index: {}]
  %s1 = inlined_call_operand.vmem [shape: f32[8,128], index: 1, kind: input, shape index: {}]
  %s2 = inlined_call_operand.vmem [shape: f32[1,128], index: 2, kind: input, shape index: {}]
  %s3 = inlined_call_operand.hbm [shape: f32[128,128], index: 3, kind: input, shape index: {}]
  %s4 = inlined_call_operand.vmem [shape: f32[1,128], index: 4, kind: input, shape index: {}]
  %s5 = inlined_call_operand.hbm [shape: f32[37,128], index: 5, kind: output, shape index: {}]
  %s6 = sld [smem:[#allocation0]]
  $region57: #{tpu_custom_call.1} parent=0
    _
  %s8 = ssub.s32 1, %s6
  %s9 = scalar_select 0, %s8, %s6
  $region1: #{tpu_custom_call.1} parent=0
    #allocation2 [shape = 'u8[65536]{0}', space=vmem, size = 0x10000, scoped, tag = 'input window, operand 3, single buffered']
    #allocation3 [shape = 's32[2]{0}', space=sflag, size = 0x8, scoped, tag = 'scoped memory for tpu_custom_call.1']
    #allocation4 [shape = 's32[2]{0}', space=sflag, size = 0x8, scoped, tag = 'scoped memory for tpu_custom_call.1']
    #allocation5 [shape = 'u8[16384]{0}', space=vmem, size = 0x4000, scoped, tag = 'output window, operand 0']
    %10 = vsyncpa [#allocation3], 0
    %11 = vsyncpa [#allocation4], 0
    %s12 = scalar_lea.sflag [#allocation4], 1
    %13 = vsyncpa %s12, 0
    loop: start=0, step=1, limit=5
    $region2: #{tpu_custom_call.1} parent=1 // loop_pre_header
      _
    $region3: #{tpu_custom_call.1} parent=1 // loop_header
      %s15 = sphi 0, %s19
      %p16 = scmp.ge.s32.totalorder %s15, 5
      %s25 = sphi 0, %s27
      %s28 = sphi 0, %s25
      %s29 = sphi 0, %s28
      %s45 = sphi 0, %s29
      %s49 = sphi 0, %s49
      %s51 = sphi 0, %s49
      %s52 = sphi 0, %s51
      %s66 = sphi 0, %s52
      %s70 = sphi 0, %s70
      %s72 = sphi 0, %s70
      %s73 = sphi 0, %s72
      %s87 = sphi 0, %s73
      %s91 = sphi 0, %s91
      %s93 = sphi 0, %s91
      %s94 = sphi 0, %s93
      %s108 = sphi 0, %s94
      %s112 = sphi 0, %s112
      %s114 = sphi 0, %s112
      %s115 = sphi 0, %s114
      %s129 = sphi 0, %s115
      %s135 = sphi 0, %s137
      %s138 = sphi 0, %s135
      %s139 = sphi 0, %s138
      %s155 = sphi 0, %s139
    $region4: #{tpu_custom_call.1} parent=1 // loop_header_branch
      %18 = sbr.rel (%p16) target = $region8
    $region5: #{tpu_custom_call.1} parent=1 // loop_body
      %s20 = ssub.s32 %s15, 1
      %s21 = ssub.s32 %s15, 2
      %s22 = sadd.s32 %s15, 1
      %s23 = ssub.s32 %s15, %s22
      %p24 = scmp.eq.s32.totalorder %s23, 0
      %s26 = sadd.s32 %s25, 1
      %s27 = scalar_select %p24, %s25, %s26
      %p30 = pneg %p24
      %p31 = scmp.eq.s32.totalorder %s15, 2
      %p32 = por %p30, %p31
      %p33 = scmp.ne.s32.totalorder %s25, %s28
      %p34 = scmp.eq.s32.totalorder %s15, 0
      %p35 = por %p33, %p34
      %p36 = scmp.ne.s32.totalorder %s25, %s28
      %p37 = scmp.eq.s32.totalorder %s20, 2
      %p38 = por %p36, %p37
      %p39 = scmp.ne.s32.totalorder %s28, %s29
      %p40 = scmp.eq.s32.totalorder %s20, 0
      %p41 = por %p39, %p40
      %p42 = scmp.ne.s32.totalorder %s28, %s29
      %p43 = scmp.eq.s32.totalorder %s21, 2
      %p44 = por %p42, %p43
      %p46 = scmp.ne.s32.totalorder %s29, %s45
      %p47 = scmp.eq.s32.totalorder %s21, 0
      %p48 = por %p46, %p47
      %s50 = sadd.s32 %s49, 1
      %p53 = scmp.eq.s32.totalorder %s15, 2
      %p54 = scmp.ne.s32.totalorder %s49, %s51
      %p55 = scmp.eq.s32.totalorder %s15, 0
      %p56 = por %p54, %p55
      %p57 = scmp.ne.s32.totalorder %s49, %s51
      %p58 = scmp.eq.s32.totalorder %s20, 2
      %p59 = por %p57, %p58
      %p60 = scmp.ne.s32.totalorder %s51, %s52
      %p61 = scmp.eq.s32.totalorder %s20, 0
      %p62 = por %p60, %p61
      %p63 = scmp.ne.s32.totalorder %s51, %s52
      %p64 = scmp.eq.s32.totalorder %s21, 2
      %p65 = por %p63, %p64
      %p67 = scmp.ne.s32.totalorder %s52, %s66
      %p68 = scmp.eq.s32.totalorder %s21, 0
      %p69 = por %p67, %p68
      %s71 = sadd.s32 %s70, 1
      %p74 = scmp.eq.s32.totalorder %s15, 2
      %p75 = scmp.ne.s32.totalorder %s70, %s72
      %p76 = scmp.eq.s32.totalorder %s15, 0
      %p77 = por %p75, %p76
      %p78 = scmp.ne.s32.totalorder %s70, %s72
      %p79 = scmp.eq.s32.totalorder %s20, 2
      %p80 = por %p78, %p79
      %p81 = scmp.ne.s32.totalorder %s72, %s73
      %p82 = scmp.eq.s32.totalorder %s20, 0
      %p83 = por %p81, %p82
      %p84 = scmp.ne.s32.totalorder %s72, %s73
      %p85 = scmp.eq.s32.totalorder %s21, 2
      %p86 = por %p84, %p85
      %p88 = scmp.ne.s32.totalorder %s73, %s87
      %p89 = scmp.eq.s32.totalorder %s21, 0
      %p90 = por %p88, %p89
      %s92 = sadd.s32 %s91, 1
      %p95 = scmp.eq.s32.totalorder %s15, 2
      %p96 = scmp.ne.s32.totalorder %s91, %s93
      %p97 = scmp.eq.s32.totalorder %s15, 0
      %p98 = por %p96, %p97
      %p99 = scmp.ne.s32.totalorder %s91, %s93
      %p100 = scmp.eq.s32.totalorder %s20, 2
      %p101 = por %p99, %p100
      %p102 = scmp.ne.s32.totalorder %s93, %s94
      %p103 = scmp.eq.s32.totalorder %s20, 0
      %p104 = por %p102, %p103
      %p105 = scmp.ne.s32.totalorder %s93, %s94
      %p106 = scmp.eq.s32.totalorder %s21, 2
      %p107 = por %p105, %p106
      %p109 = scmp.ne.s32.totalorder %s94, %s108
      %p110 = scmp.eq.s32.totalorder %s21, 0
      %p111 = por %p109, %p110
      %s113 = sadd.s32 %s112, 1
      %p116 = scmp.eq.s32.totalorder %s15, 2
      %p117 = scmp.ne.s32.totalorder %s112, %s114
      %p118 = scmp.eq.s32.totalorder %s15, 0
      %p119 = por %p117, %p118
      %p120 = scmp.ne.s32.totalorder %s112, %s114
      %p121 = scmp.eq.s32.totalorder %s20, 2
      %p122 = por %p120, %p121
      %p123 = scmp.ne.s32.totalorder %s114, %s115
      %p124 = scmp.eq.s32.totalorder %s20, 0
      %p125 = por %p123, %p124
      %p126 = scmp.ne.s32.totalorder %s114, %s115
      %p127 = scmp.eq.s32.totalorder %s21, 2
      %p128 = por %p126, %p127
      %p130 = scmp.ne.s32.totalorder %s115, %s129
      %p131 = scmp.eq.s32.totalorder %s21, 0
      %p132 = por %p130, %p131
      %s133 = ssub.s32 %s15, %s22
      %p134 = scmp.eq.s32.totalorder %s133, 0
      %s136 = sadd.s32 %s135, 1
      %s137 = scalar_select %p134, %s135, %s136
      %p140 = pneg %p134
      %p141 = scmp.eq.s32.totalorder %s15, 2
      %p142 = por %p140, %p141
      %p143 = scmp.ne.s32.totalorder %s135, %s138
      %p144 = scmp.eq.s32.totalorder %s15, 0
      %p145 = por %p143, %p144
      %p146 = scmp.ne.s32.totalorder %s135, %s138
      %p147 = scmp.eq.s32.totalorder %s20, 2
      %p148 = por %p146, %p147
      %p149 = scmp.ne.s32.totalorder %s138, %s139
      %p150 = scmp.eq.s32.totalorder %s20, 0
      %p151 = por %p149, %p150
      %p152 = scmp.ne.s32.totalorder %s138, %s139
      %p153 = scmp.eq.s32.totalorder %s21, 2
      %p154 = por %p152, %p153
      %p156 = scmp.ne.s32.totalorder %s139, %s155
      %p157 = scmp.eq.s32.totalorder %s21, 0
      %p158 = por %p156, %p157
      %p159 = scmp.le.s32.totalorder 1, %s15
      %p160 = scmp.lt.s32.totalorder %s15, 4
      %p161 = pnand %p159, %p160
      %p162 = pneg %p161
      // Predicated region
      $region9: #{tpu_custom_call.1} parent=5 // pred_check
        _
      $region10: #{tpu_custom_call.1} parent=5 // pred_check_branch
        %164 = sbr.rel (%p161) target = $region12
      $region11: #{tpu_custom_call.1} parent=5 // pred_region
        %s165 = ssub.s32 %s15, 1
        // Predicated region
        $region13: #{tpu_custom_call.1} parent=11 // pred_check
          %p166 = pneg %p62
        $region14: #{tpu_custom_call.1} parent=11 // pred_check_branch
          %168 = sbr.rel (%p166) target = $region16
        $region15: #{tpu_custom_call.1} parent=11 // pred_region
          _
        $region16: #{tpu_custom_call.1} parent=11 // pred_fallthru
          _
        // Predicated region
        $region17: #{tpu_custom_call.1} parent=11 // pred_check
          %p169 = pneg %p83
        $region18: #{tpu_custom_call.1} parent=11 // pred_check_branch
          %171 = sbr.rel (%p169) target = $region20
        $region19: #{tpu_custom_call.1} parent=11 // pred_region
          _
        $region20: #{tpu_custom_call.1} parent=11 // pred_fallthru
          _
        // Predicated region
        $region21: #{tpu_custom_call.1} parent=11 // pred_check
          %p172 = pneg %p104
        $region22: #{tpu_custom_call.1} parent=11 // pred_check_branch
          %174 = sbr.rel (%p172) target = $region24
        $region23: #{tpu_custom_call.1} parent=11 // pred_region
          %s176 = ssub.s32 2048, 2048
          %177 = vsyncadd [#allocation3], %s176
          %s178 = sshll.u32 [#allocation2], 4
          %s179 = int_to_ptr.vmem [resolvable:$true] %s178
          %184 = dma.hbm_to_vmem [thread:$0]  %s3, 2048, %s179, [#allocation3], 128, 128, 8
        $region24: #{tpu_custom_call.1} parent=11 // pred_fallthru
          _
        // Predicated region
        $region25: #{tpu_custom_call.1} parent=11 // pred_check
          %p185 = pneg %p125
        $region26: #{tpu_custom_call.1} parent=11 // pred_check_branch
          %187 = sbr.rel (%p185) target = $region28
        $region27: #{tpu_custom_call.1} parent=11 // pred_region
          _
        $region28: #{tpu_custom_call.1} parent=11 // pred_fallthru
          _
      $region12: #{tpu_custom_call.1} parent=5 // pred_fallthru
        _
      %p188 = scmp.lt.s32.totalorder %s15, 3
      // Predicated region
      $region29: #{tpu_custom_call.1} parent=5 // pred_check
        %p189 = pneg %p188
      $region30: #{tpu_custom_call.1} parent=5 // pred_check_branch
        %191 = sbr.rel (%p189) target = $region32
      $region31: #{tpu_custom_call.1} parent=5 // pred_region
        // Predicated region
        $region33: #{tpu_custom_call.1} parent=31 // pred_check
          %p192 = pneg %p35
        $region34: #{tpu_custom_call.1} parent=31 // pred_check_branch
          %194 = sbr.rel (%p192) target = $region36
        $region35: #{tpu_custom_call.1} parent=31 // pred_region
          %s195 = smul.u32 2, %s15
          %s196 = ssub.s32 5, %s195
          %p197 = scmp.lt.s32.totalorder %s196, 2
          %s198 = scalar_select %p197, %s196, 2
          %s199 = smul.u32 128, %s198
          %p200 = scmp.lt.s32.totalorder %s195, 4
          %s201 = scalar_select %p200, %s195, 4
          %s202 = smul.addr %s201, 8
          %s203 = scalar_lea.vmem %s0, %s202
          %s204 = smul.u32 2, %s15
          %s205 = ssub.s32 5, %s204
          %p206 = scmp.lt.s32.totalorder %s205, 2
          %s207 = scalar_select %p206, %s205, 2
          %s208 = smul.u32 128, %s207
        $region36: #{tpu_custom_call.1} parent=31 // pred_fallthru
          _
      $region32: #{tpu_custom_call.1} parent=5 // pred_fallthru
        _
      %p209 = scmp.le.s32.totalorder 1, %s15
      %p210 = scmp.lt.s32.totalorder %s15, 4
      %p211 = pnand %p209, %p210
      %p212 = pneg %p211
      // Predicated region
      $region37: #{tpu_custom_call.1} parent=5 // pred_check
        _
      $region38: #{tpu_custom_call.1} parent=5 // pred_check_branch
        %214 = sbr.rel (%p211) target = $region40
      $region39: #{tpu_custom_call.1} parent=5 // pred_region
        %s215 = ssub.s32 %s15, 1
        // Predicated region
        $region41: #{tpu_custom_call.1} parent=39 // pred_check
          %p216 = pneg %p104
        $region42: #{tpu_custom_call.1} parent=39 // pred_check_branch
          %218 = sbr.rel (%p216) target = $region44
        $region43: #{tpu_custom_call.1} parent=39 // pred_region
          %219 = dma.done [#allocation3], 2048
        $region44: #{tpu_custom_call.1} parent=39 // pred_fallthru
          _
        %s220 = smul.u32 2, %s20
        %s221 = ssub.s32 5, %s220
        %p222 = scmp.lt.s32.totalorder %s221, 2
        %s223 = scalar_select %p222, %s221, 2
        %s224 = smul.u32 128, %s223
        %p225 = scmp.lt.s32.totalorder %s220, 4
        %s226 = scalar_select %p225, %s220, 4
        %s227 = smul.addr %s226, 8
        %s228 = scalar_lea.vmem %s0, %s227
        %p229 = pneg %p41
        %p230 = pneg %p38
        %p231 = pneg %p62
        %p232 = pneg %p59
        %p233 = pneg %p83
        %p234 = pneg %p80
        %p235 = pneg %p104
        %p236 = pneg %p101
        %p237 = pneg %p125
        %p238 = pneg %p122
        %p239 = pneg %p151
        %p240 = pneg %p148
        %s241 = sand.u32 %s138, 1
        %s242 = scalar_lea.sflag [#allocation4], %s241
        %s243 = sand.u32 %s138, 1
        %s244 = smul.addr %s243, 16
        %s245 = scalar_lea.vmem [#allocation5], %s244
        %s246 = smul.u32 2, %s20
        %s247 = ssub.s32 5, %s246
        %p248 = scmp.lt.s32.totalorder %s247, 2
        %s249 = scalar_select %p248, %s247, 2
        %s250 = smul.u32 128, %s249
        %p251 = scmp.lt.s32.totalorder %s246, 4
        %s252 = scalar_select %p251, %s246, 4
        %s253 = smul.addr %s252, 8
        %s254 = scalar_lea.vmem %s0, %s253
        %s255 = smul.u32 2, %s20
        %s256 = ssub.s32 5, %s255
        %p257 = scmp.lt.s32.totalorder %s256, 2
        %s258 = scalar_select %p257, %s256, 2
        %s259 = smul.u32 128, %s258
        %s260 = smul.u32 2, %s20
        %s261 = ssub.s32 5, %s260
        %p262 = scmp.lt.s32.totalorder %s261, 2
        %s263 = scalar_select %p262, %s261, 2
        %s264 = smul.u32 128, %s263
        %v265 = vld [vmem:[%s254] sm:$0xff]
        %v266 = vld [vmem:[%s254 + $0x8] sm:$0xff]
        %v267 = vld [vmem:[%s1] sm:$0xff]
        %v268 = vld [vmem:[%s2] sm:$0x1]
        %v270 = vlaneseq
        %v271 = vshrl.u32 %v270, 7
        %v272 = vsub.s32 0, %v271
        %v273 = vrot.slane %v268, %v272
        %vm275 = vcmask 64512
        %v277 = vsel %vm275, %v265, 0
        %v280 = vsel %vm275, %v266, 0
        %282 = vmatprep.subr.mxu0 0.0
        %283 = vmatpush1.msra.mxu0 %v267
        %284 = vmatprep.subr.mxu0 0.0
        %285 = vmatpush1.msra.mxu0 0.0
        %286 = vmatprep.subr.mxu0 0.0
        %287 = vmatpush1.msra.mxu0 0.0
        %288 = vmatprep.subr.mxu0 0.0
        %289 = vmatpush1.msra.mxu0 0.0
        %290 = vmatprep.subr.mxu0 0.0
        %291 = vmatpush1.msra.mxu0 0.0
        %292 = vmatprep.subr.mxu0 0.0
        %293 = vmatpush1.msra.mxu0 0.0
        %294 = vmatprep.subr.mxu0 0.0
        %295 = vmatpush1.msra.mxu0 0.0
        %296 = vmatprep.subr.mxu0 0.0
        %297 = vmatpush1.msra.mxu0 0.0
        %298 = vmatprep.subr.mxu0 0.0
        %299 = vmatpush1.msra.mxu0 0.0
        %300 = vmatprep.subr.mxu0 0.0
        %301 = vmatpush1.msra.mxu0 0.0
        %302 = vmatprep.subr.mxu0 0.0
        %303 = vmatpush1.msra.mxu0 0.0
        %304 = vmatprep.subr.mxu0 0.0
        %305 = vmatpush1.msra.mxu0 0.0
        %306 = vmatprep.subr.mxu0 0.0
        %307 = vmatpush1.msra.mxu0 0.0
        %308 = vmatprep.subr.mxu0 0.0
        %309 = vmatpush1.msra.mxu0 0.0
        %310 = vmatprep.subr.mxu0 0.0
        %311 = vmatpush1.msra.mxu0 0.0
        %312 = vmatprep.subr.mxu0 0.0
        %313 = vmatpush1.msra.mxu0 0.0
        %314 = vmatprep.subr.mxu0 0.0
        %315 = vmatpush1.msra.mxu0 0.0
        %316 = vmatprep.subr.mxu0 0.0
        %317 = vmatpush1.msra.mxu0 0.0
        %318 = vmatprep.subr.mxu0 0.0
        %319 = vmatpush1.msra.mxu0 0.0
        %320 = vmatprep.subr.mxu0 0.0
        %321 = vmatpush1.msra.mxu0 0.0
        %322 = vmatprep.subr.mxu0 0.0
        %323 = vmatpush1.msra.mxu0 0.0
        %324 = vmatprep.subr.mxu0 0.0
        %325 = vmatpush1.msra.mxu0 0.0
        %326 = vmatprep.subr.mxu0 0.0
        %327 = vmatpush1.msra.mxu0 0.0
        %328 = vmatprep.subr.mxu0 0.0
        %329 = vmatpush1.msra.mxu0 0.0
        %330 = vmatprep.subr.mxu0 0.0
        %331 = vmatpush1.msra.mxu0 0.0
        %332 = vmatprep.subr.mxu0 0.0
        %333 = vmatpush1.msra.mxu0 0.0
        %334 = vmatprep.subr.mxu0 0.0
        %335 = vmatpush1.msra.mxu0 0.0
        %336 = vmatprep.subr.mxu0 0.0
        %337 = vmatpush1.msra.mxu0 0.0
        %338 = vmatprep.subr.mxu0 0.0
        %339 = vmatpush1.msra.mxu0 0.0
        %340 = vmatprep.subr.mxu0 0.0
        %341 = vmatpush1.msra.mxu0 0.0
        %342 = vmatprep.subr.mxu0 0.0
        %343 = vmatpush1.msra.mxu0 0.0
        %344 = vmatprep.subr.mxu0 0.0
        %345 = vmatpush1.msra.mxu0 0.0
        %346 = vmatprep.mubr.f32.mxu0 0.0
        %347 = vmatmul.mubr.f32.gmra.mrb[0].mxu0 %v277
        %v348 = vpop.f32.mrb[0].mxu0
        %v349 = vadd.f32 %v273, %v348
        %v350 = vpop.f32.mrb[0].mxu0
        %351 = vmatprep.mubr.f32.mxu0 0.0
        %352 = vmatmul.mubr.f32.gmra.mrb[0].mxu0 %v280
        %v353 = vpop.f32.mrb[0].mxu0
        %v354 = vadd.f32 %v273, %v353
        %v355 = vpop.f32.mrb[0].mxu0
        %356 = vdwg.mxu0
        %v357 = vmax.f32 %v349, 0.0
        %v358 = vmax.f32 %v354, 0.0
        %v359 = vld [vmem:[#allocation2] sm:$0xff]
        %v360 = vld [vmem:[#allocation2 + $0x8] sm:$0xff]
        %v361 = vld [vmem:[#allocation2 + $0x10] sm:$0xff]
        %v362 = vld [vmem:[#allocation2 + $0x18] sm:$0xff]
        %v363 = vld [vmem:[#allocation2 + $0x20] sm:$0xff]
        %v364 = vld [vmem:[#allocation2 + $0x28] sm:$0xff]
        %v365 = vld [vmem:[#allocation2 + $0x30] sm:$0xff]
        %v366 = vld [vmem:[#allocation2 + $0x38] sm:$0xff]
        %v367 = vld [vmem:[#allocation2 + $0x40] sm:$0xff]
        %v368 = vld [vmem:[#allocation2 + $0x48] sm:$0xff]
        %v369 = vld [vmem:[#allocation2 + $0x50] sm:$0xff]
        %v370 = vld [vmem:[#allocation2 + $0x58] sm:$0xff]
        %v371 = vld [vmem:[#allocation2 + $0x60] sm:$0xff]
        %v372 = vld [vmem:[#allocation2 + $0x68] sm:$0xff]
        %v373 = vld [vmem:[#allocation2 + $0x70] sm:$0xff]
        %v374 = vld [vmem:[#allocation2 + $0x78] sm:$0xff]
        %v375 = vld [vmem:[%s4] sm:$0x1]
        %v377 = vlaneseq
        %v378 = vshrl.u32 %v377, 7
        %v379 = vsub.s32 0, %v378
        %v380 = vrot.slane %v375, %v379
        %382 = vmatprep.subr.mxu0 0.0
        %383 = vmatpush1.msra.mxu0 %v359
        %384 = vmatprep.subr.mxu0 0.0
        %385 = vmatpush1.msra.mxu0 %v360
        %386 = vmatprep.subr.mxu0 0.0
        %387 = vmatpush1.msra.mxu0 %v361
        %388 = vmatprep.subr.mxu0 0.0
        %389 = vmatpush1.msra.mxu0 %v362
        %390 = vmatprep.subr.mxu0 0.0
        %391 = vmatpush1.msra.mxu0 %v363
        %392 = vmatprep.subr.mxu0 0.0
        %393 = vmatpush1.msra.mxu0 %v364
        %394 = vmatprep.subr.mxu0 0.0
        %395 = vmatpush1.msra.mxu0 %v365
        %396 = vmatprep.subr.mxu0 0.0
        %397 = vmatpush1.msra.mxu0 %v366
        %398 = vmatprep.subr.mxu0 0.0
        %399 = vmatpush1.msra.mxu0 %v367
        %400 = vmatprep.subr.mxu0 0.0
        %401 = vmatpush1.msra.mxu0 %v368
        %402 = vmatprep.subr.mxu0 0.0
        %403 = vmatpush1.msra.mxu0 %v369
        %404 = vmatprep.subr.mxu0 0.0
        %405 = vmatpush1.msra.mxu0 %v370
        %406 = vmatprep.subr.mxu0 0.0
        %407 = vmatpush1.msra.mxu0 %v371
        %408 = vmatprep.subr.mxu0 0.0
        %409 = vmatpush1.msra.mxu0 %v372
        %410 = vmatprep.subr.mxu0 0.0
        %411 = vmatpush1.msra.mxu0 %v373
        %412 = vmatprep.subr.mxu0 0.0
        %413 = vmatpush1.msra.mxu0 %v374
        %414 = vmatprep.subr.mxu0 0.0
        %415 = vmatpush1.msra.mxu0 0.0
        %416 = vmatprep.subr.mxu0 0.0
        %417 = vmatpush1.msra.mxu0 0.0
        %418 = vmatprep.subr.mxu0 0.0
        %419 = vmatpush1.msra.mxu0 0.0
        %420 = vmatprep.subr.mxu0 0.0
        %421 = vmatpush1.msra.mxu0 0.0
        %422 = vmatprep.subr.mxu0 0.0
        %423 = vmatpush1.msra.mxu0 0.0
        %424 = vmatprep.subr.mxu0 0.0
        %425 = vmatpush1.msra.mxu0 0.0
        %426 = vmatprep.subr.mxu0 0.0
        %427 = vmatpush1.msra.mxu0 0.0
        %428 = vmatprep.subr.mxu0 0.0
        %429 = vmatpush1.msra.mxu0 0.0
        %430 = vmatprep.subr.mxu0 0.0
        %431 = vmatpush1.msra.mxu0 0.0
        %432 = vmatprep.subr.mxu0 0.0
        %433 = vmatpush1.msra.mxu0 0.0
        %434 = vmatprep.subr.mxu0 0.0
        %435 = vmatpush1.msra.mxu0 0.0
        %436 = vmatprep.subr.mxu0 0.0
        %437 = vmatpush1.msra.mxu0 0.0
        %438 = vmatprep.subr.mxu0 0.0
        %439 = vmatpush1.msra.mxu0 0.0
        %440 = vmatprep.subr.mxu0 0.0
        %441 = vmatpush1.msra.mxu0 0.0
        %442 = vmatprep.subr.mxu0 0.0
        %443 = vmatpush1.msra.mxu0 0.0
        %444 = vmatprep.subr.mxu0 0.0
        %445 = vmatpush1.msra.mxu0 0.0
        %446 = vmatprep.mubr.f32.mxu0 0.0
        %447 = vmatmul.mubr.f32.gmra.mrb[0].mxu0 %v357
        %v448 = vpop.f32.mrb[0].mxu0
        %v449 = vadd.f32 %v380, %v448
        %v450 = vpop.f32.mrb[0].mxu0
        %451 = vmatprep.mubr.f32.mxu0 0.0
        %452 = vmatmul.mubr.f32.gmra.mrb[0].mxu0 %v358
        %v453 = vpop.f32.mrb[0].mxu0
        %v454 = vadd.f32 %v380, %v453
        %v455 = vpop.f32.mrb[0].mxu0
        %456 = vdwg.mxu0
        %v457 = vmax.f32 %v449, 0.0
        %v458 = vmax.f32 %v454, 0.0
        %459 = vst [vmem:[%s245] sm:$0xff] %v457
        %460 = vst [vmem:[%s245 + $0x8] sm:$0xff] %v458
        %s461 = sand.u32 %s138, 1
        %s462 = scalar_lea.sflag [#allocation4], %s461
        %s463 = sand.u32 %s138, 1
        %s464 = smul.addr %s463, 16
        %s465 = scalar_lea.vmem [#allocation5], %s464
        // Predicated region
        $region45: #{tpu_custom_call.1} parent=39 // pred_check
          %p466 = pneg %p148
        $region46: #{tpu_custom_call.1} parent=39 // pred_check_branch
          %468 = sbr.rel (%p466) target = $region48
        $region47: #{tpu_custom_call.1} parent=39 // pred_region
          %s469 = smul.u32 2, %s20
          %s470 = ssub.s32 5, %s469
          %p471 = scmp.lt.s32.totalorder %s470, 2
          %s472 = scalar_select %p471, %s470, 2
          %s473 = smul.u32 128, %s472
          %s475 = ssub.s32 256, %s473
          %476 = vsyncadd %s462, %s475
          %p477 = scmp.ne.s32.totalorder 0, %s473
          %s478 = smul.addr %s469, 128
          %s479 = scalar_lea.hbm %s5, %s478
          %s480 = smul.u32 8, %s472
          %s481 = sshll.u32 %s465, 4
          %s482 = int_to_ptr.vmem [resolvable:$true] %s481
          %s483 = sshll.u32 %s480, 4
          %487 = dma.vmem_to_hbm [thread:$0]  (%p477), %s482, %s483, %s479, %s462, 128, 128, 8
        $region48: #{tpu_custom_call.1} parent=39 // pred_fallthru
          _
      $region40: #{tpu_custom_call.1} parent=5 // pred_fallthru
        _
      %p488 = scmp.le.s32.totalorder 2, %s15
      // Predicated region
      $region49: #{tpu_custom_call.1} parent=5 // pred_check
        %p489 = pneg %p488
      $region50: #{tpu_custom_call.1} parent=5 // pred_check_branch
        %491 = sbr.rel (%p489) target = $region52
      $region51: #{tpu_custom_call.1} parent=5 // pred_region
        %s492 = ssub.s32 %s15, 2
        // Predicated region
        $region53: #{tpu_custom_call.1} parent=51 // pred_check
          %p493 = pneg %p154
        $region54: #{tpu_custom_call.1} parent=51 // pred_check_branch
          %495 = sbr.rel (%p493) target = $region56
        $region55: #{tpu_custom_call.1} parent=51 // pred_region
          %s496 = sand.u32 %s139, 1
          %s497 = scalar_lea.sflag [#allocation4], %s496
          %s498 = sand.u32 %s139, 1
          %s499 = smul.addr %s498, 16
          %s500 = scalar_lea.vmem [#allocation5], %s499
          %501 = dma.done %s497, 256
        $region56: #{tpu_custom_call.1} parent=51 // pred_fallthru
          _
      $region52: #{tpu_custom_call.1} parent=5 // pred_fallthru
        _
    $region6: #{tpu_custom_call.1} parent=1 // loop_footer
      %s19 = sadd.s32 1, %s15
    $region7: #{tpu_custom_call.1} parent=1 // loop_footer_branch
      %14 = sbr.rel target = $region3
    $region8: #{tpu_custom_call.1} parent=1 // loop_exit
      _
    %502 = vsyncpa [#allocation3], 1
    %s503 = scalar_lea.sflag [#allocation3], 1
    %504 = vsyncpa %s503, 1
    %505 = vsyncpa [#allocation4], 1
    %s506 = scalar_lea.sflag [#allocation4], 1
    %507 = vsyncpa %s506, 1

</llo_original>
